<compile_context>
chip_gen: v7x
topology: tpu7x:2x2x1
jax: 0.10.0
libtpu: 0.0.40
codegen_flags: <defaults>
</compile_context>

<pallas_src>
import math

import jax
import jax.numpy as jnp
from jax.experimental import pallas as pl
from jax.experimental.pallas import tpu as pltpu

EPS = 1e-5
VMEM_LIMIT = 32 * 1024 * 1024  # tiny working set; safe on v5e/v6e/v7x


# --------------------------------------------------------------------------
# Fused kernel: MaxPool2d(2) -> (Conv3x3 + folded BN + ReLU) x 2
# --------------------------------------------------------------------------

def _lane_shift(x, off, m):
    """result[:, i] = x[:, (i + off) mod m] via static slices + lane concat."""
    sh = off % m
    if sh == 0:
        return x
    return jnp.concatenate([x[:, sh:], x[:, :sh]], axis=1)


def _make_down_kernel(ho, wo, cin, cout):
    m = ho * wo

    def tap_pack(x):
        """x: (C, m) flat image -> (9*C, m) packed-K RHS for one 3x3 conv.

        Each tap (dy, dx) is a static lane shift of the flat image plus a
        border mask (replaces explicit zero padding); masks come from a lane
        iota, so there are no sublane-misaligned slices and no wrap columns.
        """
        midx = jax.lax.broadcasted_iota(jnp.int32, (1, m), 1)
        if wo & (wo - 1) == 0:
            xx = jnp.bitwise_and(midx, wo - 1)        # column index (Wo pow2)
        else:
            xx = midx % wo
        taps = []
        for dy in range(3):
            for dx in range(3):
                oy, ox = dy - 1, dx - 1
                if oy == 0 and ox == 0:
                    taps.append(x)
                    continue
                t = _lane_shift(x, oy * wo + ox, m)
                valid = ((midx >= (-oy) * wo) & (midx < (ho - oy) * wo) &
                         (xx >= -ox) & (xx < wo - ox))
                taps.append(jnp.where(valid, t, jnp.zeros_like(t)))
        return jnp.concatenate(taps, axis=0)          # (9*C, m)

    def kernel(x_ref, w1_ref, b1_ref, w2_ref, b2_ref, o_ref):
        # MaxPool2d(2): the wrapper pre-gathered the 4 pool taps on axis 0.
        pooled = jnp.max(x_ref[0], axis=0)            # (cin, m) bf16

        # Conv1 (3x3, pad=1) + folded BN + ReLU: one packed-K MXU dot.
        r1 = tap_pack(pooled)                         # (9*cin, m)
        y1 = jnp.dot(w1_ref[...], r1, preferred_element_type=jnp.float32)
        a1 = jnp.maximum(y1 + b1_ref[...], 0.0).astype(jnp.bfloat16)  # (cout, m)

        # Conv2 (3x3, pad=1) + folded BN + ReLU.
        r2 = tap_pack(a1)                             # (9*cout, m)
        y2 = jnp.dot(w2_ref[...], r2, preferred_element_type=jnp.float32)
        o_ref[0] = jnp.maximum(y2 + b2_ref[...], 0.0)  # (cout, m) f32

    return kernel


def down_forward(params, x_nchw):
    """Down: MaxPool2d(2) -> DoubleConv.  NCHW f32 in, NCHW f32 out."""
    n, cin, h, w = x_nchw.shape
    assert h % 2 == 0 and w % 2 == 0
    ho, wo = h // 2, w // 2
    m = ho * wo
    cout = params["w1"].shape[0]

    # Pre-gather the 4 maxpool taps, channel-major with flat spatial last:
    # (N, 4, Cin, Ho*Wo).  One small fused XLA transpose on the raw input;
    # the kernel then keeps pixels on the lane axis end-to-end.
    xt = (x_nchw.astype(jnp.bfloat16)
          .reshape(n, cin, ho, 2, wo, 2)
          .transpose(0, 3, 5, 1, 2, 4)
          .reshape(n, 4, cin, m))

    flops = n * (2 * m * 9 * cin * cout + 2 * m * 9 * cout * cout)
    bytes_accessed = (xt.size * 2 + params["w1"].size * 2 + params["w2"].size * 2
                      + params["b1"].size * 4 + params["b2"].size * 4
                      + n * cout * m * 4)

    out = pl.pallas_call(
        _make_down_kernel(ho, wo, cin, cout),
        out_shape=jax.ShapeDtypeStruct((n, cout, m), jnp.float32),
        grid_spec=pltpu.PrefetchScalarGridSpec(
            num_scalar_prefetch=0,
            grid=(n,),
            in_specs=[
                pl.BlockSpec((1, 4, cin, m), lambda i: (i, 0, 0, 0)),
                pl.BlockSpec((cout, 9 * cin), lambda i: (0, 0)),
                pl.BlockSpec((cout, 1), lambda i: (0, 0)),
                pl.BlockSpec((cout, 9 * cout), lambda i: (0, 0)),
                pl.BlockSpec((cout, 1), lambda i: (0, 0)),
            ],
            out_specs=pl.BlockSpec((1, cout, m), lambda i: (i, 0, 0)),
        ),
        compiler_params=pltpu.CompilerParams(
            dimension_semantics=("parallel",),
            vmem_limit_bytes=VMEM_LIMIT),
        cost_estimate=pl.CostEstimate(
            flops=int(flops), transcendentals=0,
            bytes_accessed=int(bytes_accessed)),
    )(xt, params["w1"], params["b1"], params["w2"], params["b2"])

    # (N, Cout, Ho*Wo) is already NCHW-flat: reshape is free, no transpose.
    return out.reshape(n, cout, ho, wo)


# --------------------------------------------------------------------------
# Parameters (deterministic, synthetic); BN folded into weights + shift.
# --------------------------------------------------------------------------

class KeyGen:
    def __init__(self, key):
        self.key = key

    def __call__(self):
        self.key, k = jax.random.split(self.key)
        return k


def _conv_bn_folded(kg, cin, cout):
    fan_in = cin * 9
    w = jax.random.normal(kg(), (cout, cin, 3, 3), jnp.float32) / math.sqrt(fan_in)
    b = 0.1 * jax.random.normal(kg(), (cout,), jnp.float32)
    gamma = 1.0 + 0.1 * jax.random.normal(kg(), (cout,), jnp.float32)
    beta = 0.1 * jax.random.normal(kg(), (cout,), jnp.float32)
    mean = 0.1 * jax.random.normal(kg(), (cout,), jnp.float32)
    var = jnp.abs(1.0 + 0.1 * jax.random.normal(kg(), (cout,), jnp.float32))
    scale = gamma / jnp.sqrt(var + EPS)
    shift = (b - mean) * scale + beta
    # (cout, cin, 3, 3) -> (cout, 3, 3, cin) -> (cout, 9*cin); column index is
    # (dy*3 + dx)*cin + ci, matching the kernel's tap-pack order.  BN scale is
    # folded into the bf16 MXU weights.
    wp = jnp.transpose(w, (0, 2, 3, 1)).reshape(cout, 9 * cin)
    wp = (wp * scale[:, None]).astype(jnp.bfloat16)
    return wp, shift.reshape(cout, 1).astype(jnp.float32)


def init_down_params(key, cin, cout):
    kg = KeyGen(key)
    w1, b1 = _conv_bn_folded(kg, cin, cout)
    w2, b2 = _conv_bn_folded(kg, cout, cout)
    return {"w1": w1, "b1": b1, "w2": w2, "b2": b2}


# --------------------------------------------------------------------------
# Pure-JAX reference (same bf16 quantization points) for a sanity check.
# --------------------------------------------------------------------------

def _conv_ref(w_packed, shift, x_f32):
    cout = w_packed.shape[0]
    cin = w_packed.shape[1] // 9
    w = (w_packed.astype(jnp.float32)
         .reshape(cout, 3, 3, cin).transpose(0, 3, 1, 2))      # OIHW
    y = jax.lax.conv_general_dilated(
        x_f32, w, window_strides=(1, 1), padding=((1, 1), (1, 1)),
        dimension_numbers=("NCHW", "OIHW", "NCHW"))
    return jnp.maximum(y + shift.reshape(1, cout, 1, 1), 0.0)


def down_forward_ref(params, x_nchw):
    xb = x_nchw.astype(jnp.bfloat16)
    n, cin, h, w = xb.shape
    p = jnp.max(xb.reshape(n, cin, h // 2, 2, w // 2, 2), axis=(3, 5))
    a1 = _conv_ref(params["w1"], params["b1"],
                   p.astype(jnp.float32)).astype(jnp.bfloat16)
    a2 = _conv_ref(params["w2"], params["b2"], a1.astype(jnp.float32))
    return a2.astype(jnp.float32)


if __name__ == "__main__":
    key = jax.random.PRNGKey(0)
    pkey, xkey = jax.random.split(key)
    params = init_down_params(pkey, cin=4, cout=8)
    # PyTorch-style NCHW input: Down(4, 8) on (2, 4, 16, 16).
    x = jax.random.normal(xkey, (2, 4, 16, 16), jnp.float32)

    out = jax.block_until_ready(jax.jit(down_forward)(params, x))
    assert out.shape == (2, 8, 8, 8), out.shape
    assert bool(jnp.all(jnp.isfinite(out)))

    ref = jax.block_until_ready(down_forward_ref(params, x))
    err = float(jnp.max(jnp.abs(out - ref)))
    assert bool(jnp.allclose(out, ref, atol=2e-2, rtol=2e-2)), err

    print("KERNEL_OK")
</pallas_src>

<mosaic_0001>
module attributes {stable_mosaic.version = 11 : i64} {
  func.func @kernel(%arg0: i32, %arg1: memref<1x4x4x64xbf16, #tpu.memory_space<vmem>>, %arg2: memref<8x36xbf16, #tpu.memory_space<vmem>>, %arg3: memref<8x1xf32, #tpu.memory_space<vmem>>, %arg4: memref<8x72xbf16, #tpu.memory_space<vmem>>, %arg5: memref<8x1xf32, #tpu.memory_space<vmem>>, %arg6: memref<1x8x64xf32, #tpu.memory_space<vmem>>) attributes {dimension_semantics = [#tpu.dimension_semantics<parallel>], iteration_bounds = array<i64: 2>, scalar_prefetch = 0 : i64, scratch_operands = 0 : i64, tpu.core_type = #tpu.core_type<tc>, window_params = [{transform_indices = @transform_0, window_bounds = array<i64: 1, 4, 4, 64>}, {pipeline_mode = #tpu.pipeline_mode<synchronous>, transform_indices = @transform_1, window_bounds = array<i64: 8, 36>}, {pipeline_mode = #tpu.pipeline_mode<synchronous>, transform_indices = @transform_2, window_bounds = array<i64: 8, 1>}, {pipeline_mode = #tpu.pipeline_mode<synchronous>, transform_indices = @transform_3, window_bounds = array<i64: 8, 72>}, {pipeline_mode = #tpu.pipeline_mode<synchronous>, transform_indices = @transform_4, window_bounds = array<i64: 8, 1>}, {transform_indices = @transform_5, window_bounds = array<i64: 1, 8, 64>}]} {
    %c0 = arith.constant 0 : index
    %c0_0 = arith.constant 0 : index
    %c0_1 = arith.constant 0 : index
    %c0_2 = arith.constant 0 : index
    %0 = vector.load %arg1[%c0, %c0_0, %c0_1, %c0_2] : memref<1x4x4x64xbf16, #tpu.memory_space<vmem>>, vector<1x4x4x64xbf16>
    %1 = vector.shape_cast %0 : vector<1x4x4x64xbf16> to vector<4x4x64xbf16>
    %cst = arith.constant dense<0xFF80> : vector<4x64xbf16>
    %2 = vector.multi_reduction <maximumf>, %1, %cst [0] : vector<4x4x64xbf16> to vector<4x64xbf16>
    %3 = tpu.iota {dimensions = array<i32: 1>} : vector<1x64xi32>
    %c7_i32 = arith.constant 7 : i32
    %4 = vector.broadcast %c7_i32 : i32 to vector<1x64xi32>
    %5 = arith.andi %3, %4 : vector<1x64xi32>
    %6 = vector.extract_strided_slice %2 {offsets = [0, 55], sizes = [4, 9], strides = [1, 1]} : vector<4x64xbf16> to vector<4x9xbf16>
    %7 = vector.extract_strided_slice %2 {offsets = [0, 0], sizes = [4, 55], strides = [1, 1]} : vector<4x64xbf16> to vector<4x55xbf16>
    %8 = tpu.concatenate %6, %7 in 1 : vector<4x9xbf16>, vector<4x55xbf16> -> vector<4x64xbf16>
    %c8_i32 = arith.constant 8 : i32
    %9 = vector.broadcast %c8_i32 : i32 to vector<1x64xi32>
    %10 = arith.cmpi sge, %3, %9 : vector<1x64xi32>
    %c72_i32 = arith.constant 72 : i32
    %11 = vector.broadcast %c72_i32 : i32 to vector<1x64xi32>
    %12 = arith.cmpi slt, %3, %11 : vector<1x64xi32>
    %13 = arith.andi %10, %12 : vector<1x64xi1>
    %c1_i32 = arith.constant 1 : i32
    %14 = vector.broadcast %c1_i32 : i32 to vector<1x64xi32>
    %15 = arith.cmpi sge, %5, %14 : vector<1x64xi32>
    %16 = arith.andi %13, %15 : vector<1x64xi1>
    %c9_i32 = arith.constant 9 : i32
    %17 = vector.broadcast %c9_i32 : i32 to vector<1x64xi32>
    %18 = arith.cmpi slt, %5, %17 : vector<1x64xi32>
    %19 = arith.andi %16, %18 : vector<1x64xi1>
    %cst_3 = arith.constant 0.000000e+00 : bf16
    %20 = vector.broadcast %cst_3 : bf16 to vector<4x64xbf16>
    %21 = vector.shape_cast %19 : vector<1x64xi1> to vector<1x64xi1>
    %22 = vector.broadcast %21 : vector<1x64xi1> to vector<4x64xi1>
    %23 = arith.select %22, %8, %20 : vector<4x64xi1>, vector<4x64xbf16>
    %24 = vector.extract_strided_slice %2 {offsets = [0, 56], sizes = [4, 8], strides = [1, 1]} : vector<4x64xbf16> to vector<4x8xbf16>
    %25 = vector.extract_strided_slice %2 {offsets = [0, 0], sizes = [4, 56], strides = [1, 1]} : vector<4x64xbf16> to vector<4x56xbf16>
    %26 = tpu.concatenate %24, %25 in 1 : vector<4x8xbf16>, vector<4x56xbf16> -> vector<4x64xbf16>
    %c8_i32_4 = arith.constant 8 : i32
    %27 = vector.broadcast %c8_i32_4 : i32 to vector<1x64xi32>
    %28 = arith.cmpi sge, %3, %27 : vector<1x64xi32>
    %c72_i32_5 = arith.constant 72 : i32
    %29 = vector.broadcast %c72_i32_5 : i32 to vector<1x64xi32>
    %30 = arith.cmpi slt, %3, %29 : vector<1x64xi32>
    %31 = arith.andi %28, %30 : vector<1x64xi1>
    %c0_i32 = arith.constant 0 : i32
    %32 = vector.broadcast %c0_i32 : i32 to vector<1x64xi32>
    %33 = arith.cmpi sge, %5, %32 : vector<1x64xi32>
    %34 = arith.andi %31, %33 : vector<1x64xi1>
    %c8_i32_6 = arith.constant 8 : i32
    %35 = vector.broadcast %c8_i32_6 : i32 to vector<1x64xi32>
    %36 = arith.cmpi slt, %5, %35 : vector<1x64xi32>
    %37 = arith.andi %34, %36 : vector<1x64xi1>
    %cst_7 = arith.constant 0.000000e+00 : bf16
    %38 = vector.broadcast %cst_7 : bf16 to vector<4x64xbf16>
    %39 = vector.shape_cast %37 : vector<1x64xi1> to vector<1x64xi1>
    %40 = vector.broadcast %39 : vector<1x64xi1> to vector<4x64xi1>
    %41 = arith.select %40, %26, %38 : vector<4x64xi1>, vector<4x64xbf16>
    %42 = vector.extract_strided_slice %2 {offsets = [0, 57], sizes = [4, 7], strides = [1, 1]} : vector<4x64xbf16> to vector<4x7xbf16>
    %43 = vector.extract_strided_slice %2 {offsets = [0, 0], sizes = [4, 57], strides = [1, 1]} : vector<4x64xbf16> to vector<4x57xbf16>
    %44 = tpu.concatenate %42, %43 in 1 : vector<4x7xbf16>, vector<4x57xbf16> -> vector<4x64xbf16>
    %c8_i32_8 = arith.constant 8 : i32
    %45 = vector.broadcast %c8_i32_8 : i32 to vector<1x64xi32>
    %46 = arith.cmpi sge, %3, %45 : vector<1x64xi32>
    %c72_i32_9 = arith.constant 72 : i32
    %47 = vector.broadcast %c72_i32_9 : i32 to vector<1x64xi32>
    %48 = arith.cmpi slt, %3, %47 : vector<1x64xi32>
    %49 = arith.andi %46, %48 : vector<1x64xi1>
    %c-1_i32 = arith.constant -1 : i32
    %50 = vector.broadcast %c-1_i32 : i32 to vector<1x64xi32>
    %51 = arith.cmpi sge, %5, %50 : vector<1x64xi32>
    %52 = arith.andi %49, %51 : vector<1x64xi1>
    %c7_i32_10 = arith.constant 7 : i32
    %53 = vector.broadcast %c7_i32_10 : i32 to vector<1x64xi32>
    %54 = arith.cmpi slt, %5, %53 : vector<1x64xi32>
    %55 = arith.andi %52, %54 : vector<1x64xi1>
    %cst_11 = arith.constant 0.000000e+00 : bf16
    %56 = vector.broadcast %cst_11 : bf16 to vector<4x64xbf16>
    %57 = vector.shape_cast %55 : vector<1x64xi1> to vector<1x64xi1>
    %58 = vector.broadcast %57 : vector<1x64xi1> to vector<4x64xi1>
    %59 = arith.select %58, %44, %56 : vector<4x64xi1>, vector<4x64xbf16>
    %60 = vector.extract_strided_slice %2 {offsets = [0, 63], sizes = [4, 1], strides = [1, 1]} : vector<4x64xbf16> to vector<4x1xbf16>
    %61 = vector.extract_strided_slice %2 {offsets = [0, 0], sizes = [4, 63], strides = [1, 1]} : vector<4x64xbf16> to vector<4x63xbf16>
    %62 = tpu.concatenate %60, %61 in 1 : vector<4x1xbf16>, vector<4x63xbf16> -> vector<4x64xbf16>
    %c0_i32_12 = arith.constant 0 : i32
    %63 = vector.broadcast %c0_i32_12 : i32 to vector<1x64xi32>
    %64 = arith.cmpi sge, %3, %63 : vector<1x64xi32>
    %c64_i32 = arith.constant 64 : i32
    %65 = vector.broadcast %c64_i32 : i32 to vector<1x64xi32>
    %66 = arith.cmpi slt, %3, %65 : vector<1x64xi32>
    %67 = arith.andi %64, %66 : vector<1x64xi1>
    %c1_i32_13 = arith.constant 1 : i32
    %68 = vector.broadcast %c1_i32_13 : i32 to vector<1x64xi32>
    %69 = arith.cmpi sge, %5, %68 : vector<1x64xi32>
    %70 = arith.andi %67, %69 : vector<1x64xi1>
    %c9_i32_14 = arith.constant 9 : i32
    %71 = vector.broadcast %c9_i32_14 : i32 to vector<1x64xi32>
    %72 = arith.cmpi slt, %5, %71 : vector<1x64xi32>
    %73 = arith.andi %70, %72 : vector<1x64xi1>
    %cst_15 = arith.constant 0.000000e+00 : bf16
    %74 = vector.broadcast %cst_15 : bf16 to vector<4x64xbf16>
    %75 = vector.shape_cast %73 : vector<1x64xi1> to vector<1x64xi1>
    %76 = vector.broadcast %75 : vector<1x64xi1> to vector<4x64xi1>
    %77 = arith.select %76, %62, %74 : vector<4x64xi1>, vector<4x64xbf16>
    %78 = vector.extract_strided_slice %2 {offsets = [0, 1], sizes = [4, 63], strides = [1, 1]} : vector<4x64xbf16> to vector<4x63xbf16>
    %79 = vector.extract_strided_slice %2 {offsets = [0, 0], sizes = [4, 1], strides = [1, 1]} : vector<4x64xbf16> to vector<4x1xbf16>
    %80 = tpu.concatenate %78, %79 in 1 : vector<4x63xbf16>, vector<4x1xbf16> -> vector<4x64xbf16>
    %c0_i32_16 = arith.constant 0 : i32
    %81 = vector.broadcast %c0_i32_16 : i32 to vector<1x64xi32>
    %82 = arith.cmpi sge, %3, %81 : vector<1x64xi32>
    %c64_i32_17 = arith.constant 64 : i32
    %83 = vector.broadcast %c64_i32_17 : i32 to vector<1x64xi32>
    %84 = arith.cmpi slt, %3, %83 : vector<1x64xi32>
    %85 = arith.andi %82, %84 : vector<1x64xi1>
    %c-1_i32_18 = arith.constant -1 : i32
    %86 = vector.broadcast %c-1_i32_18 : i32 to vector<1x64xi32>
    %87 = arith.cmpi sge, %5, %86 : vector<1x64xi32>
    %88 = arith.andi %85, %87 : vector<1x64xi1>
    %c7_i32_19 = arith.constant 7 : i32
    %89 = vector.broadcast %c7_i32_19 : i32 to vector<1x64xi32>
    %90 = arith.cmpi slt, %5, %89 : vector<1x64xi32>
    %91 = arith.andi %88, %90 : vector<1x64xi1>
    %cst_20 = arith.constant 0.000000e+00 : bf16
    %92 = vector.broadcast %cst_20 : bf16 to vector<4x64xbf16>
    %93 = vector.shape_cast %91 : vector<1x64xi1> to vector<1x64xi1>
    %94 = vector.broadcast %93 : vector<1x64xi1> to vector<4x64xi1>
    %95 = arith.select %94, %80, %92 : vector<4x64xi1>, vector<4x64xbf16>
    %96 = vector.extract_strided_slice %2 {offsets = [0, 7], sizes = [4, 57], strides = [1, 1]} : vector<4x64xbf16> to vector<4x57xbf16>
    %97 = vector.extract_strided_slice %2 {offsets = [0, 0], sizes = [4, 7], strides = [1, 1]} : vector<4x64xbf16> to vector<4x7xbf16>
    %98 = tpu.concatenate %96, %97 in 1 : vector<4x57xbf16>, vector<4x7xbf16> -> vector<4x64xbf16>
    %c-8_i32 = arith.constant -8 : i32
    %99 = vector.broadcast %c-8_i32 : i32 to vector<1x64xi32>
    %100 = arith.cmpi sge, %3, %99 : vector<1x64xi32>
    %c56_i32 = arith.constant 56 : i32
    %101 = vector.broadcast %c56_i32 : i32 to vector<1x64xi32>
    %102 = arith.cmpi slt, %3, %101 : vector<1x64xi32>
    %103 = arith.andi %100, %102 : vector<1x64xi1>
    %c1_i32_21 = arith.constant 1 : i32
    %104 = vector.broadcast %c1_i32_21 : i32 to vector<1x64xi32>
    %105 = arith.cmpi sge, %5, %104 : vector<1x64xi32>
    %106 = arith.andi %103, %105 : vector<1x64xi1>
    %c9_i32_22 = arith.constant 9 : i32
    %107 = vector.broadcast %c9_i32_22 : i32 to vector<1x64xi32>
    %108 = arith.cmpi slt, %5, %107 : vector<1x64xi32>
    %109 = arith.andi %106, %108 : vector<1x64xi1>
    %cst_23 = arith.constant 0.000000e+00 : bf16
    %110 = vector.broadcast %cst_23 : bf16 to vector<4x64xbf16>
    %111 = vector.shape_cast %109 : vector<1x64xi1> to vector<1x64xi1>
    %112 = vector.broadcast %111 : vector<1x64xi1> to vector<4x64xi1>
    %113 = arith.select %112, %98, %110 : vector<4x64xi1>, vector<4x64xbf16>
    %114 = vector.extract_strided_slice %2 {offsets = [0, 8], sizes = [4, 56], strides = [1, 1]} : vector<4x64xbf16> to vector<4x56xbf16>
    %115 = vector.extract_strided_slice %2 {offsets = [0, 0], sizes = [4, 8], strides = [1, 1]} : vector<4x64xbf16> to vector<4x8xbf16>
    %116 = tpu.concatenate %114, %115 in 1 : vector<4x56xbf16>, vector<4x8xbf16> -> vector<4x64xbf16>
    %c-8_i32_24 = arith.constant -8 : i32
    %117 = vector.broadcast %c-8_i32_24 : i32 to vector<1x64xi32>
    %118 = arith.cmpi sge, %3, %117 : vector<1x64xi32>
    %c56_i32_25 = arith.constant 56 : i32
    %119 = vector.broadcast %c56_i32_25 : i32 to vector<1x64xi32>
    %120 = arith.cmpi slt, %3, %119 : vector<1x64xi32>
    %121 = arith.andi %118, %120 : vector<1x64xi1>
    %c0_i32_26 = arith.constant 0 : i32
    %122 = vector.broadcast %c0_i32_26 : i32 to vector<1x64xi32>
    %123 = arith.cmpi sge, %5, %122 : vector<1x64xi32>
    %124 = arith.andi %121, %123 : vector<1x64xi1>
    %c8_i32_27 = arith.constant 8 : i32
    %125 = vector.broadcast %c8_i32_27 : i32 to vector<1x64xi32>
    %126 = arith.cmpi slt, %5, %125 : vector<1x64xi32>
    %127 = arith.andi %124, %126 : vector<1x64xi1>
    %cst_28 = arith.constant 0.000000e+00 : bf16
    %128 = vector.broadcast %cst_28 : bf16 to vector<4x64xbf16>
    %129 = vector.shape_cast %127 : vector<1x64xi1> to vector<1x64xi1>
    %130 = vector.broadcast %129 : vector<1x64xi1> to vector<4x64xi1>
    %131 = arith.select %130, %116, %128 : vector<4x64xi1>, vector<4x64xbf16>
    %132 = vector.extract_strided_slice %2 {offsets = [0, 9], sizes = [4, 55], strides = [1, 1]} : vector<4x64xbf16> to vector<4x55xbf16>
    %133 = vector.extract_strided_slice %2 {offsets = [0, 0], sizes = [4, 9], strides = [1, 1]} : vector<4x64xbf16> to vector<4x9xbf16>
    %134 = tpu.concatenate %132, %133 in 1 : vector<4x55xbf16>, vector<4x9xbf16> -> vector<4x64xbf16>
    %c-8_i32_29 = arith.constant -8 : i32
    %135 = vector.broadcast %c-8_i32_29 : i32 to vector<1x64xi32>
    %136 = arith.cmpi sge, %3, %135 : vector<1x64xi32>
    %c56_i32_30 = arith.constant 56 : i32
    %137 = vector.broadcast %c56_i32_30 : i32 to vector<1x64xi32>
    %138 = arith.cmpi slt, %3, %137 : vector<1x64xi32>
    %139 = arith.andi %136, %138 : vector<1x64xi1>
    %c-1_i32_31 = arith.constant -1 : i32
    %140 = vector.broadcast %c-1_i32_31 : i32 to vector<1x64xi32>
    %141 = arith.cmpi sge, %5, %140 : vector<1x64xi32>
    %142 = arith.andi %139, %141 : vector<1x64xi1>
    %c7_i32_32 = arith.constant 7 : i32
    %143 = vector.broadcast %c7_i32_32 : i32 to vector<1x64xi32>
    %144 = arith.cmpi slt, %5, %143 : vector<1x64xi32>
    %145 = arith.andi %142, %144 : vector<1x64xi1>
    %cst_33 = arith.constant 0.000000e+00 : bf16
    %146 = vector.broadcast %cst_33 : bf16 to vector<4x64xbf16>
    %147 = vector.shape_cast %145 : vector<1x64xi1> to vector<1x64xi1>
    %148 = vector.broadcast %147 : vector<1x64xi1> to vector<4x64xi1>
    %149 = arith.select %148, %134, %146 : vector<4x64xi1>, vector<4x64xbf16>
    %150 = tpu.concatenate %23, %41, %59, %77, %2, %95, %113, %131, %149 in 0 : vector<4x64xbf16>, vector<4x64xbf16>, vector<4x64xbf16>, vector<4x64xbf16>, vector<4x64xbf16>, vector<4x64xbf16>, vector<4x64xbf16>, vector<4x64xbf16>, vector<4x64xbf16> -> vector<36x64xbf16>
    %c0_34 = arith.constant 0 : index
    %c0_35 = arith.constant 0 : index
    %151 = vector.load %arg2[%c0_34, %c0_35] : memref<8x36xbf16, #tpu.memory_space<vmem>>, vector<8x36xbf16>
    %cst_36 = arith.constant dense<0.000000e+00> : vector<8x64xf32>
    %152 = tpu.matmul %151, %150, %cst_36 {dimension_numbers = #tpu.dot_dimension_numbers<[1], [0], [0], [1], [0, 0, 1, 1], [], []>} : vector<8x36xbf16>, vector<36x64xbf16>, vector<8x64xf32> -> vector<8x64xf32>
    %c0_37 = arith.constant 0 : index
    %c0_38 = arith.constant 0 : index
    %153 = vector.load %arg3[%c0_37, %c0_38] : memref<8x1xf32, #tpu.memory_space<vmem>>, vector<8x1xf32>
    %154 = vector.broadcast %153 : vector<8x1xf32> to vector<8x64xf32>
    %155 = arith.addf %152, %154 : vector<8x64xf32>
    %cst_39 = arith.constant 0.000000e+00 : f32
    %156 = vector.broadcast %cst_39 : f32 to vector<8x64xf32>
    %157 = arith.maximumf %155, %156 : vector<8x64xf32>
    %158 = arith.truncf %157 : vector<8x64xf32> to vector<8x64xbf16>
    %159 = tpu.iota {dimensions = array<i32: 1>} : vector<1x64xi32>
    %c7_i32_40 = arith.constant 7 : i32
    %160 = vector.broadcast %c7_i32_40 : i32 to vector<1x64xi32>
    %161 = arith.andi %159, %160 : vector<1x64xi32>
    %162 = vector.extract_strided_slice %158 {offsets = [0, 55], sizes = [8, 9], strides = [1, 1]} : vector<8x64xbf16> to vector<8x9xbf16>
    %163 = vector.extract_strided_slice %158 {offsets = [0, 0], sizes = [8, 55], strides = [1, 1]} : vector<8x64xbf16> to vector<8x55xbf16>
    %164 = tpu.concatenate %162, %163 in 1 : vector<8x9xbf16>, vector<8x55xbf16> -> vector<8x64xbf16>
    %c8_i32_41 = arith.constant 8 : i32
    %165 = vector.broadcast %c8_i32_41 : i32 to vector<1x64xi32>
    %166 = arith.cmpi sge, %159, %165 : vector<1x64xi32>
    %c72_i32_42 = arith.constant 72 : i32
    %167 = vector.broadcast %c72_i32_42 : i32 to vector<1x64xi32>
    %168 = arith.cmpi slt, %159, %167 : vector<1x64xi32>
    %169 = arith.andi %166, %168 : vector<1x64xi1>
    %c1_i32_43 = arith.constant 1 : i32
    %170 = vector.broadcast %c1_i32_43 : i32 to vector<1x64xi32>
    %171 = arith.cmpi sge, %161, %170 : vector<1x64xi32>
    %172 = arith.andi %169, %171 : vector<1x64xi1>
    %c9_i32_44 = arith.constant 9 : i32
    %173 = vector.broadcast %c9_i32_44 : i32 to vector<1x64xi32>
    %174 = arith.cmpi slt, %161, %173 : vector<1x64xi32>
    %175 = arith.andi %172, %174 : vector<1x64xi1>
    %cst_45 = arith.constant 0.000000e+00 : bf16
    %176 = vector.broadcast %cst_45 : bf16 to vector<8x64xbf16>
    %177 = vector.shape_cast %175 : vector<1x64xi1> to vector<1x64xi1>
    %178 = vector.broadcast %177 : vector<1x64xi1> to vector<8x64xi1>
    %179 = arith.select %178, %164, %176 : vector<8x64xi1>, vector<8x64xbf16>
    %180 = vector.extract_strided_slice %158 {offsets = [0, 56], sizes = [8, 8], strides = [1, 1]} : vector<8x64xbf16> to vector<8x8xbf16>
    %181 = vector.extract_strided_slice %158 {offsets = [0, 0], sizes = [8, 56], strides = [1, 1]} : vector<8x64xbf16> to vector<8x56xbf16>
    %182 = tpu.concatenate %180, %181 in 1 : vector<8x8xbf16>, vector<8x56xbf16> -> vector<8x64xbf16>
    %c8_i32_46 = arith.constant 8 : i32
    %183 = vector.broadcast %c8_i32_46 : i32 to vector<1x64xi32>
    %184 = arith.cmpi sge, %159, %183 : vector<1x64xi32>
    %c72_i32_47 = arith.constant 72 : i32
    %185 = vector.broadcast %c72_i32_47 : i32 to vector<1x64xi32>
    %186 = arith.cmpi slt, %159, %185 : vector<1x64xi32>
    %187 = arith.andi %184, %186 : vector<1x64xi1>
    %c0_i32_48 = arith.constant 0 : i32
    %188 = vector.broadcast %c0_i32_48 : i32 to vector<1x64xi32>
    %189 = arith.cmpi sge, %161, %188 : vector<1x64xi32>
    %190 = arith.andi %187, %189 : vector<1x64xi1>
    %c8_i32_49 = arith.constant 8 : i32
    %191 = vector.broadcast %c8_i32_49 : i32 to vector<1x64xi32>
    %192 = arith.cmpi slt, %161, %191 : vector<1x64xi32>
    %193 = arith.andi %190, %192 : vector<1x64xi1>
    %cst_50 = arith.constant 0.000000e+00 : bf16
    %194 = vector.broadcast %cst_50 : bf16 to vector<8x64xbf16>
    %195 = vector.shape_cast %193 : vector<1x64xi1> to vector<1x64xi1>
    %196 = vector.broadcast %195 : vector<1x64xi1> to vector<8x64xi1>
    %197 = arith.select %196, %182, %194 : vector<8x64xi1>, vector<8x64xbf16>
    %198 = vector.extract_strided_slice %158 {offsets = [0, 57], sizes = [8, 7], strides = [1, 1]} : vector<8x64xbf16> to vector<8x7xbf16>
    %199 = vector.extract_strided_slice %158 {offsets = [0, 0], sizes = [8, 57], strides = [1, 1]} : vector<8x64xbf16> to vector<8x57xbf16>
    %200 = tpu.concatenate %198, %199 in 1 : vector<8x7xbf16>, vector<8x57xbf16> -> vector<8x64xbf16>
    %c8_i32_51 = arith.constant 8 : i32
    %201 = vector.broadcast %c8_i32_51 : i32 to vector<1x64xi32>
    %202 = arith.cmpi sge, %159, %201 : vector<1x64xi32>
    %c72_i32_52 = arith.constant 72 : i32
    %203 = vector.broadcast %c72_i32_52 : i32 to vector<1x64xi32>
    %204 = arith.cmpi slt, %159, %203 : vector<1x64xi32>
    %205 = arith.andi %202, %204 : vector<1x64xi1>
    %c-1_i32_53 = arith.constant -1 : i32
    %206 = vector.broadcast %c-1_i32_53 : i32 to vector<1x64xi32>
    %207 = arith.cmpi sge, %161, %206 : vector<1x64xi32>
    %208 = arith.andi %205, %207 : vector<1x64xi1>
    %c7_i32_54 = arith.constant 7 : i32
    %209 = vector.broadcast %c7_i32_54 : i32 to vector<1x64xi32>
    %210 = arith.cmpi slt, %161, %209 : vector<1x64xi32>
    %211 = arith.andi %208, %210 : vector<1x64xi1>
    %cst_55 = arith.constant 0.000000e+00 : bf16
    %212 = vector.broadcast %cst_55 : bf16 to vector<8x64xbf16>
    %213 = vector.shape_cast %211 : vector<1x64xi1> to vector<1x64xi1>
    %214 = vector.broadcast %213 : vector<1x64xi1> to vector<8x64xi1>
    %215 = arith.select %214, %200, %212 : vector<8x64xi1>, vector<8x64xbf16>
    %216 = vector.extract_strided_slice %158 {offsets = [0, 63], sizes = [8, 1], strides = [1, 1]} : vector<8x64xbf16> to vector<8x1xbf16>
    %217 = vector.extract_strided_slice %158 {offsets = [0, 0], sizes = [8, 63], strides = [1, 1]} : vector<8x64xbf16> to vector<8x63xbf16>
    %218 = tpu.concatenate %216, %217 in 1 : vector<8x1xbf16>, vector<8x63xbf16> -> vector<8x64xbf16>
    %c0_i32_56 = arith.constant 0 : i32
    %219 = vector.broadcast %c0_i32_56 : i32 to vector<1x64xi32>
    %220 = arith.cmpi sge, %159, %219 : vector<1x64xi32>
    %c64_i32_57 = arith.constant 64 : i32
    %221 = vector.broadcast %c64_i32_57 : i32 to vector<1x64xi32>
    %222 = arith.cmpi slt, %159, %221 : vector<1x64xi32>
    %223 = arith.andi %220, %222 : vector<1x64xi1>
    %c1_i32_58 = arith.constant 1 : i32
    %224 = vector.broadcast %c1_i32_58 : i32 to vector<1x64xi32>
    %225 = arith.cmpi sge, %161, %224 : vector<1x64xi32>
    %226 = arith.andi %223, %225 : vector<1x64xi1>
    %c9_i32_59 = arith.constant 9 : i32
    %227 = vector.broadcast %c9_i32_59 : i32 to vector<1x64xi32>
    %228 = arith.cmpi slt, %161, %227 : vector<1x64xi32>
    %229 = arith.andi %226, %228 : vector<1x64xi1>
    %cst_60 = arith.constant 0.000000e+00 : bf16
    %230 = vector.broadcast %cst_60 : bf16 to vector<8x64xbf16>
    %231 = vector.shape_cast %229 : vector<1x64xi1> to vector<1x64xi1>
    %232 = vector.broadcast %231 : vector<1x64xi1> to vector<8x64xi1>
    %233 = arith.select %232, %218, %230 : vector<8x64xi1>, vector<8x64xbf16>
    %234 = vector.extract_strided_slice %158 {offsets = [0, 1], sizes = [8, 63], strides = [1, 1]} : vector<8x64xbf16> to vector<8x63xbf16>
    %235 = vector.extract_strided_slice %158 {offsets = [0, 0], sizes = [8, 1], strides = [1, 1]} : vector<8x64xbf16> to vector<8x1xbf16>
    %236 = tpu.concatenate %234, %235 in 1 : vector<8x63xbf16>, vector<8x1xbf16> -> vector<8x64xbf16>
    %c0_i32_61 = arith.constant 0 : i32
    %237 = vector.broadcast %c0_i32_61 : i32 to vector<1x64xi32>
    %238 = arith.cmpi sge, %159, %237 : vector<1x64xi32>
    %c64_i32_62 = arith.constant 64 : i32
    %239 = vector.broadcast %c64_i32_62 : i32 to vector<1x64xi32>
    %240 = arith.cmpi slt, %159, %239 : vector<1x64xi32>
    %241 = arith.andi %238, %240 : vector<1x64xi1>
    %c-1_i32_63 = arith.constant -1 : i32
    %242 = vector.broadcast %c-1_i32_63 : i32 to vector<1x64xi32>
    %243 = arith.cmpi sge, %161, %242 : vector<1x64xi32>
    %244 = arith.andi %241, %243 : vector<1x64xi1>
    %c7_i32_64 = arith.constant 7 : i32
    %245 = vector.broadcast %c7_i32_64 : i32 to vector<1x64xi32>
    %246 = arith.cmpi slt, %161, %245 : vector<1x64xi32>
    %247 = arith.andi %244, %246 : vector<1x64xi1>
    %cst_65 = arith.constant 0.000000e+00 : bf16
    %248 = vector.broadcast %cst_65 : bf16 to vector<8x64xbf16>
    %249 = vector.shape_cast %247 : vector<1x64xi1> to vector<1x64xi1>
    %250 = vector.broadcast %249 : vector<1x64xi1> to vector<8x64xi1>
    %251 = arith.select %250, %236, %248 : vector<8x64xi1>, vector<8x64xbf16>
    %252 = vector.extract_strided_slice %158 {offsets = [0, 7], sizes = [8, 57], strides = [1, 1]} : vector<8x64xbf16> to vector<8x57xbf16>
    %253 = vector.extract_strided_slice %158 {offsets = [0, 0], sizes = [8, 7], strides = [1, 1]} : vector<8x64xbf16> to vector<8x7xbf16>
    %254 = tpu.concatenate %252, %253 in 1 : vector<8x57xbf16>, vector<8x7xbf16> -> vector<8x64xbf16>
    %c-8_i32_66 = arith.constant -8 : i32
    %255 = vector.broadcast %c-8_i32_66 : i32 to vector<1x64xi32>
    %256 = arith.cmpi sge, %159, %255 : vector<1x64xi32>
    %c56_i32_67 = arith.constant 56 : i32
    %257 = vector.broadcast %c56_i32_67 : i32 to vector<1x64xi32>
    %258 = arith.cmpi slt, %159, %257 : vector<1x64xi32>
    %259 = arith.andi %256, %258 : vector<1x64xi1>
    %c1_i32_68 = arith.constant 1 : i32
    %260 = vector.broadcast %c1_i32_68 : i32 to vector<1x64xi32>
    %261 = arith.cmpi sge, %161, %260 : vector<1x64xi32>
    %262 = arith.andi %259, %261 : vector<1x64xi1>
    %c9_i32_69 = arith.constant 9 : i32
    %263 = vector.broadcast %c9_i32_69 : i32 to vector<1x64xi32>
    %264 = arith.cmpi slt, %161, %263 : vector<1x64xi32>
    %265 = arith.andi %262, %264 : vector<1x64xi1>
    %cst_70 = arith.constant 0.000000e+00 : bf16
    %266 = vector.broadcast %cst_70 : bf16 to vector<8x64xbf16>
    %267 = vector.shape_cast %265 : vector<1x64xi1> to vector<1x64xi1>
    %268 = vector.broadcast %267 : vector<1x64xi1> to vector<8x64xi1>
    %269 = arith.select %268, %254, %266 : vector<8x64xi1>, vector<8x64xbf16>
    %270 = vector.extract_strided_slice %158 {offsets = [0, 8], sizes = [8, 56], strides = [1, 1]} : vector<8x64xbf16> to vector<8x56xbf16>
    %271 = vector.extract_strided_slice %158 {offsets = [0, 0], sizes = [8, 8], strides = [1, 1]} : vector<8x64xbf16> to vector<8x8xbf16>
    %272 = tpu.concatenate %270, %271 in 1 : vector<8x56xbf16>, vector<8x8xbf16> -> vector<8x64xbf16>
    %c-8_i32_71 = arith.constant -8 : i32
    %273 = vector.broadcast %c-8_i32_71 : i32 to vector<1x64xi32>
    %274 = arith.cmpi sge, %159, %273 : vector<1x64xi32>
    %c56_i32_72 = arith.constant 56 : i32
    %275 = vector.broadcast %c56_i32_72 : i32 to vector<1x64xi32>
    %276 = arith.cmpi slt, %159, %275 : vector<1x64xi32>
    %277 = arith.andi %274, %276 : vector<1x64xi1>
    %c0_i32_73 = arith.constant 0 : i32
    %278 = vector.broadcast %c0_i32_73 : i32 to vector<1x64xi32>
    %279 = arith.cmpi sge, %161, %278 : vector<1x64xi32>
    %280 = arith.andi %277, %279 : vector<1x64xi1>
    %c8_i32_74 = arith.constant 8 : i32
    %281 = vector.broadcast %c8_i32_74 : i32 to vector<1x64xi32>
    %282 = arith.cmpi slt, %161, %281 : vector<1x64xi32>
    %283 = arith.andi %280, %282 : vector<1x64xi1>
    %cst_75 = arith.constant 0.000000e+00 : bf16
    %284 = vector.broadcast %cst_75 : bf16 to vector<8x64xbf16>
    %285 = vector.shape_cast %283 : vector<1x64xi1> to vector<1x64xi1>
    %286 = vector.broadcast %285 : vector<1x64xi1> to vector<8x64xi1>
    %287 = arith.select %286, %272, %284 : vector<8x64xi1>, vector<8x64xbf16>
    %288 = vector.extract_strided_slice %158 {offsets = [0, 9], sizes = [8, 55], strides = [1, 1]} : vector<8x64xbf16> to vector<8x55xbf16>
    %289 = vector.extract_strided_slice %158 {offsets = [0, 0], sizes = [8, 9], strides = [1, 1]} : vector<8x64xbf16> to vector<8x9xbf16>
    %290 = tpu.concatenate %288, %289 in 1 : vector<8x55xbf16>, vector<8x9xbf16> -> vector<8x64xbf16>
    %c-8_i32_76 = arith.constant -8 : i32
    %291 = vector.broadcast %c-8_i32_76 : i32 to vector<1x64xi32>
    %292 = arith.cmpi sge, %159, %291 : vector<1x64xi32>
    %c56_i32_77 = arith.constant 56 : i32
    %293 = vector.broadcast %c56_i32_77 : i32 to vector<1x64xi32>
    %294 = arith.cmpi slt, %159, %293 : vector<1x64xi32>
    %295 = arith.andi %292, %294 : vector<1x64xi1>
    %c-1_i32_78 = arith.constant -1 : i32
    %296 = vector.broadcast %c-1_i32_78 : i32 to vector<1x64xi32>
    %297 = arith.cmpi sge, %161, %296 : vector<1x64xi32>
    %298 = arith.andi %295, %297 : vector<1x64xi1>
    %c7_i32_79 = arith.constant 7 : i32
    %299 = vector.broadcast %c7_i32_79 : i32 to vector<1x64xi32>
    %300 = arith.cmpi slt, %161, %299 : vector<1x64xi32>
    %301 = arith.andi %298, %300 : vector<1x64xi1>
    %cst_80 = arith.constant 0.000000e+00 : bf16
    %302 = vector.broadcast %cst_80 : bf16 to vector<8x64xbf16>
    %303 = vector.shape_cast %301 : vector<1x64xi1> to vector<1x64xi1>
    %304 = vector.broadcast %303 : vector<1x64xi1> to vector<8x64xi1>
    %305 = arith.select %304, %290, %302 : vector<8x64xi1>, vector<8x64xbf16>
    %306 = tpu.concatenate %179, %197, %215, %233, %158, %251, %269, %287, %305 in 0 : vector<8x64xbf16>, vector<8x64xbf16>, vector<8x64xbf16>, vector<8x64xbf16>, vector<8x64xbf16>, vector<8x64xbf16>, vector<8x64xbf16>, vector<8x64xbf16>, vector<8x64xbf16> -> vector<72x64xbf16>
    %c0_81 = arith.constant 0 : index
    %c0_82 = arith.constant 0 : index
    %307 = vector.load %arg4[%c0_81, %c0_82] : memref<8x72xbf16, #tpu.memory_space<vmem>>, vector<8x72xbf16>
    %cst_83 = arith.constant dense<0.000000e+00> : vector<8x64xf32>
    %308 = tpu.matmul %307, %306, %cst_83 {dimension_numbers = #tpu.dot_dimension_numbers<[1], [0], [0], [1], [0, 0, 1, 1], [], []>} : vector<8x72xbf16>, vector<72x64xbf16>, vector<8x64xf32> -> vector<8x64xf32>
    %c0_84 = arith.constant 0 : index
    %c0_85 = arith.constant 0 : index
    %309 = vector.load %arg5[%c0_84, %c0_85] : memref<8x1xf32, #tpu.memory_space<vmem>>, vector<8x1xf32>
    %310 = vector.broadcast %309 : vector<8x1xf32> to vector<8x64xf32>
    %311 = arith.addf %308, %310 : vector<8x64xf32>
    %cst_86 = arith.constant 0.000000e+00 : f32
    %312 = vector.broadcast %cst_86 : f32 to vector<8x64xf32>
    %313 = arith.maximumf %311, %312 : vector<8x64xf32>
    %c0_87 = arith.constant 0 : index
    %c0_88 = arith.constant 0 : index
    %c0_89 = arith.constant 0 : index
    %314 = vector.load %arg6[%c0_87, %c0_88, %c0_89] : memref<1x8x64xf32, #tpu.memory_space<vmem>>, vector<1x8x64xf32>
    %315 = vector.shape_cast %314 : vector<1x8x64xf32> to vector<8x64xf32>
    %316 = vector.shape_cast %313 : vector<8x64xf32> to vector<1x8x64xf32>
    tpu.vector_store %arg6[%c0_87, %c0_88, %c0_89], %316 {strides = array<i32>} : memref<1x8x64xf32, #tpu.memory_space<vmem>>, vector<1x8x64xf32>,
    return
  }
  func.func @transform_0(%arg0: i32) -> (i32, i32, i32, i32) {
    %c0_i32 = arith.constant 0 : i32
    %c0_i32_0 = arith.constant 0 : i32
    %c0_i32_1 = arith.constant 0 : i32
    %c0_i32_2 = arith.constant 0 : i32
    return %arg0, %c0_i32, %c0_i32_0, %c0_i32_1 : i32, i32, i32, i32
  }
  func.func @transform_1(%arg0: i32) -> (i32, i32) {
    %c0_i32 = arith.constant 0 : i32
    %c0_i32_0 = arith.constant 0 : i32
    %c0_i32_1 = arith.constant 0 : i32
    return %c0_i32, %c0_i32_0 : i32, i32
  }
  func.func @transform_2(%arg0: i32) -> (i32, i32) {
    %c0_i32 = arith.constant 0 : i32
    %c0_i32_0 = arith.constant 0 : i32
    %c0_i32_1 = arith.constant 0 : i32
    return %c0_i32, %c0_i32_0 : i32, i32
  }
  func.func @transform_3(%arg0: i32) -> (i32, i32) {
    %c0_i32 = arith.constant 0 : i32
    %c0_i32_0 = arith.constant 0 : i32
    %c0_i32_1 = arith.constant 0 : i32
    return %c0_i32, %c0_i32_0 : i32, i32
  }
  func.func @transform_4(%arg0: i32) -> (i32, i32) {
    %c0_i32 = arith.constant 0 : i32
    %c0_i32_0 = arith.constant 0 : i32
    %c0_i32_1 = arith.constant 0 : i32
    return %c0_i32, %c0_i32_0 : i32, i32
  }
  func.func @transform_5(%arg0: i32) -> (i32, i32, i32) {
    %c0_i32 = arith.constant 0 : i32
    %c0_i32_0 = arith.constant 0 : i32
    %c0_i32_1 = arith.constant 0 : i32
    return %arg0, %c0_i32, %c0_i32_0 : i32, i32, i32
  }
}

</mosaic_0001>

<llo_original>
// kernel: down_forward.1
$region0: #{down_forward.1}
  #allocation0 [shape = 'u32[]', space=smem, size = 0x4, offset = 0x4, fixed_abs, tag = 'smem constant byte address 0x4 - core index']
  #allocation1 [shape = 'u32[144,128]{1,0:T(1,128)}', space=vmem, size = 0x12000, scoped, tag = 'internal scratch']
  %s0 = inlined_call_operand.vmem [shape: bf16[2,4,4,64], index: 0, kind: input, shape index: {}]
  %s1 = inlined_call_operand.vmem [shape: bf16[8,36], index: 1, kind: input, shape index: {}]
  %s2 = inlined_call_operand.vmem [shape: f32[8,1], index: 2, kind: input, shape index: {}]
  %s3 = inlined_call_operand.vmem [shape: bf16[8,72], index: 3, kind: input, shape index: {}]
  %s4 = inlined_call_operand.vmem [shape: f32[8,1], index: 4, kind: input, shape index: {}]
  %s5 = inlined_call_operand.vmem [shape: f32[2,8,64], index: 5, kind: output, shape index: {}]
  %s6 = sld [smem:[#allocation0]]
  $region53: #{down_forward.1} parent=0
    _
  %s8 = ssub.s32 1, %s6
  %s9 = scalar_select 0, %s8, %s6
  loop: start=0, step=1, limit=4
  $region2: #{down_forward.1} parent=0 // loop_pre_header
    _
  $region3: #{down_forward.1} parent=0 // loop_header
    %s11 = sphi 0, %s15
    %p12 = scmp.ge.s32.totalorder %s11, 4
    %s21 = sphi 0, %s23
    %s24 = sphi 0, %s21
    %s25 = sphi 0, %s24
    %s41 = sphi 0, %s25
    %s45 = sphi 0, %s45
    %s47 = sphi 0, %s45
    %s48 = sphi 0, %s47
    %s62 = sphi 0, %s48
    %s66 = sphi 0, %s66
    %s68 = sphi 0, %s66
    %s69 = sphi 0, %s68
    %s83 = sphi 0, %s69
    %s87 = sphi 0, %s87
    %s89 = sphi 0, %s87
    %s90 = sphi 0, %s89
    %s104 = sphi 0, %s90
    %s108 = sphi 0, %s108
    %s110 = sphi 0, %s108
    %s111 = sphi 0, %s110
    %s125 = sphi 0, %s111
    %s131 = sphi 0, %s133
    %s134 = sphi 0, %s131
    %s135 = sphi 0, %s134
    %s151 = sphi 0, %s135
  $region4: #{down_forward.1} parent=0 // loop_header_branch
    %14 = sbr.rel (%p12) target = $region8
  $region5: #{down_forward.1} parent=0 // loop_body
    %s16 = ssub.s32 %s11, 1
    %s17 = ssub.s32 %s11, 2
    %s18 = sadd.s32 %s11, 1
    %s19 = ssub.s32 %s11, %s18
    %p20 = scmp.eq.s32.totalorder %s19, 0
    %s22 = sadd.s32 %s21, 1
    %s23 = scalar_select %p20, %s21, %s22
    %p26 = pneg %p20
    %p27 = scmp.eq.s32.totalorder %s11, 1
    %p28 = por %p26, %p27
    %p29 = scmp.ne.s32.totalorder %s21, %s24
    %p30 = scmp.eq.s32.totalorder %s11, 0
    %p31 = por %p29, %p30
    %p32 = scmp.ne.s32.totalorder %s21, %s24
    %p33 = scmp.eq.s32.totalorder %s16, 1
    %p34 = por %p32, %p33
    %p35 = scmp.ne.s32.totalorder %s24, %s25
    %p36 = scmp.eq.s32.totalorder %s16, 0
    %p37 = por %p35, %p36
    %p38 = scmp.ne.s32.totalorder %s24, %s25
    %p39 = scmp.eq.s32.totalorder %s17, 1
    %p40 = por %p38, %p39
    %p42 = scmp.ne.s32.totalorder %s25, %s41
    %p43 = scmp.eq.s32.totalorder %s17, 0
    %p44 = por %p42, %p43
    %s46 = sadd.s32 %s45, 1
    %p49 = scmp.eq.s32.totalorder %s11, 1
    %p50 = scmp.ne.s32.totalorder %s45, %s47
    %p51 = scmp.eq.s32.totalorder %s11, 0
    %p52 = por %p50, %p51
    %p53 = scmp.ne.s32.totalorder %s45, %s47
    %p54 = scmp.eq.s32.totalorder %s16, 1
    %p55 = por %p53, %p54
    %p56 = scmp.ne.s32.totalorder %s47, %s48
    %p57 = scmp.eq.s32.totalorder %s16, 0
    %p58 = por %p56, %p57
    %p59 = scmp.ne.s32.totalorder %s47, %s48
    %p60 = scmp.eq.s32.totalorder %s17, 1
    %p61 = por %p59, %p60
    %p63 = scmp.ne.s32.totalorder %s48, %s62
    %p64 = scmp.eq.s32.totalorder %s17, 0
    %p65 = por %p63, %p64
    %s67 = sadd.s32 %s66, 1
    %p70 = scmp.eq.s32.totalorder %s11, 1
    %p71 = scmp.ne.s32.totalorder %s66, %s68
    %p72 = scmp.eq.s32.totalorder %s11, 0
    %p73 = por %p71, %p72
    %p74 = scmp.ne.s32.totalorder %s66, %s68
    %p75 = scmp.eq.s32.totalorder %s16, 1
    %p76 = por %p74, %p75
    %p77 = scmp.ne.s32.totalorder %s68, %s69
    %p78 = scmp.eq.s32.totalorder %s16, 0
    %p79 = por %p77, %p78
    %p80 = scmp.ne.s32.totalorder %s68, %s69
    %p81 = scmp.eq.s32.totalorder %s17, 1
    %p82 = por %p80, %p81
    %p84 = scmp.ne.s32.totalorder %s69, %s83
    %p85 = scmp.eq.s32.totalorder %s17, 0
    %p86 = por %p84, %p85
    %s88 = sadd.s32 %s87, 1
    %p91 = scmp.eq.s32.totalorder %s11, 1
    %p92 = scmp.ne.s32.totalorder %s87, %s89
    %p93 = scmp.eq.s32.totalorder %s11, 0
    %p94 = por %p92, %p93
    %p95 = scmp.ne.s32.totalorder %s87, %s89
    %p96 = scmp.eq.s32.totalorder %s16, 1
    %p97 = por %p95, %p96
    %p98 = scmp.ne.s32.totalorder %s89, %s90
    %p99 = scmp.eq.s32.totalorder %s16, 0
    %p100 = por %p98, %p99
    %p101 = scmp.ne.s32.totalorder %s89, %s90
    %p102 = scmp.eq.s32.totalorder %s17, 1
    %p103 = por %p101, %p102
    %p105 = scmp.ne.s32.totalorder %s90, %s104
    %p106 = scmp.eq.s32.totalorder %s17, 0
    %p107 = por %p105, %p106
    %s109 = sadd.s32 %s108, 1
    %p112 = scmp.eq.s32.totalorder %s11, 1
    %p113 = scmp.ne.s32.totalorder %s108, %s110
    %p114 = scmp.eq.s32.totalorder %s11, 0
    %p115 = por %p113, %p114
    %p116 = scmp.ne.s32.totalorder %s108, %s110
    %p117 = scmp.eq.s32.totalorder %s16, 1
    %p118 = por %p116, %p117
    %p119 = scmp.ne.s32.totalorder %s110, %s111
    %p120 = scmp.eq.s32.totalorder %s16, 0
    %p121 = por %p119, %p120
    %p122 = scmp.ne.s32.totalorder %s110, %s111
    %p123 = scmp.eq.s32.totalorder %s17, 1
    %p124 = por %p122, %p123
    %p126 = scmp.ne.s32.totalorder %s111, %s125
    %p127 = scmp.eq.s32.totalorder %s17, 0
    %p128 = por %p126, %p127
    %s129 = ssub.s32 %s11, %s18
    %p130 = scmp.eq.s32.totalorder %s129, 0
    %s132 = sadd.s32 %s131, 1
    %s133 = scalar_select %p130, %s131, %s132
    %p136 = pneg %p130
    %p137 = scmp.eq.s32.totalorder %s11, 1
    %p138 = por %p136, %p137
    %p139 = scmp.ne.s32.totalorder %s131, %s134
    %p140 = scmp.eq.s32.totalorder %s11, 0
    %p141 = por %p139, %p140
    %p142 = scmp.ne.s32.totalorder %s131, %s134
    %p143 = scmp.eq.s32.totalorder %s16, 1
    %p144 = por %p142, %p143
    %p145 = scmp.ne.s32.totalorder %s134, %s135
    %p146 = scmp.eq.s32.totalorder %s16, 0
    %p147 = por %p145, %p146
    %p148 = scmp.ne.s32.totalorder %s134, %s135
    %p149 = scmp.eq.s32.totalorder %s17, 1
    %p150 = por %p148, %p149
    %p152 = scmp.ne.s32.totalorder %s135, %s151
    %p153 = scmp.eq.s32.totalorder %s17, 0
    %p154 = por %p152, %p153
    %p155 = scmp.le.s32.totalorder 1, %s11
    %p156 = scmp.lt.s32.totalorder %s11, 3
    %p157 = pnand %p155, %p156
    %p158 = pneg %p157
    // Predicated region
    $region9: #{down_forward.1} parent=5 // pred_check
      _
    $region10: #{down_forward.1} parent=5 // pred_check_branch
      %160 = sbr.rel (%p157) target = $region12
    $region11: #{down_forward.1} parent=5 // pred_region
      %s161 = ssub.s32 %s11, 1
      // Predicated region
      $region13: #{down_forward.1} parent=11 // pred_check
        %p162 = pneg %p58
      $region14: #{down_forward.1} parent=11 // pred_check_branch
        %164 = sbr.rel (%p162) target = $region16
      $region15: #{down_forward.1} parent=11 // pred_region
        _
      $region16: #{down_forward.1} parent=11 // pred_fallthru
        _
      // Predicated region
      $region17: #{down_forward.1} parent=11 // pred_check
        %p165 = pneg %p79
      $region18: #{down_forward.1} parent=11 // pred_check_branch
        %167 = sbr.rel (%p165) target = $region20
      $region19: #{down_forward.1} parent=11 // pred_region
        _
      $region20: #{down_forward.1} parent=11 // pred_fallthru
        _
      // Predicated region
      $region21: #{down_forward.1} parent=11 // pred_check
        %p168 = pneg %p100
      $region22: #{down_forward.1} parent=11 // pred_check_branch
        %170 = sbr.rel (%p168) target = $region24
      $region23: #{down_forward.1} parent=11 // pred_region
        _
      $region24: #{down_forward.1} parent=11 // pred_fallthru
        _
      // Predicated region
      $region25: #{down_forward.1} parent=11 // pred_check
        %p171 = pneg %p121
      $region26: #{down_forward.1} parent=11 // pred_check_branch
        %173 = sbr.rel (%p171) target = $region28
      $region27: #{down_forward.1} parent=11 // pred_region
        _
      $region28: #{down_forward.1} parent=11 // pred_fallthru
        _
    $region12: #{down_forward.1} parent=5 // pred_fallthru
      _
    %p174 = scmp.lt.s32.totalorder %s11, 2
    // Predicated region
    $region29: #{down_forward.1} parent=5 // pred_check
      %p175 = pneg %p174
    $region30: #{down_forward.1} parent=5 // pred_check_branch
      %177 = sbr.rel (%p175) target = $region32
    $region31: #{down_forward.1} parent=5 // pred_region
      // Predicated region
      $region33: #{down_forward.1} parent=31 // pred_check
        %p178 = pneg %p31
      $region34: #{down_forward.1} parent=31 // pred_check_branch
        %180 = sbr.rel (%p178) target = $region36
      $region35: #{down_forward.1} parent=31 // pred_region
        %p181 = scmp.lt.s32.totalorder %s11, 1
        %s182 = scalar_select %p181, %s11, 1
        %s183 = smul.addr %s182, 4
        %s184 = smul.addr %s183, 2
        %s185 = scalar_lea.vmem %s0, %s184
      $region36: #{down_forward.1} parent=31 // pred_fallthru
        _
    $region32: #{down_forward.1} parent=5 // pred_fallthru
      _
    %p186 = scmp.le.s32.totalorder 1, %s11
    %p187 = scmp.lt.s32.totalorder %s11, 3
    %p188 = pnand %p186, %p187
    %p189 = pneg %p188
    // Predicated region
    $region37: #{down_forward.1} parent=5 // pred_check
      _
    $region38: #{down_forward.1} parent=5 // pred_check_branch
      %191 = sbr.rel (%p188) target = $region40
    $region39: #{down_forward.1} parent=5 // pred_region
      %s192 = ssub.s32 %s11, 1
      %p193 = scmp.lt.s32.totalorder %s16, 1
      %s194 = scalar_select %p193, %s16, 1
      %s195 = smul.addr %s194, 4
      %s196 = smul.addr %s195, 2
      %s197 = scalar_lea.vmem %s0, %s196
      %p198 = pneg %p37
      %p199 = pneg %p34
      %p200 = pneg %p58
      %p201 = pneg %p55
      %p202 = pneg %p79
      %p203 = pneg %p76
      %p204 = pneg %p100
      %p205 = pneg %p97
      %p206 = pneg %p121
      %p207 = pneg %p118
      %p208 = pneg %p147
      %p209 = pneg %p144
      %p210 = scmp.lt.s32.totalorder %s16, 1
      %s211 = scalar_select %p210, %s16, 1
      %s212 = smul.addr %s211, 8
      %s213 = scalar_lea.vmem %s5, %s212
      %p214 = scmp.lt.s32.totalorder %s16, 1
      %s215 = scalar_select %p214, %s16, 1
      %s216 = smul.addr %s215, 4
      %s217 = smul.addr %s216, 2
      %s218 = scalar_lea.vmem %s0, %s217
      %p219 = scmp.lt.s32.totalorder %s16, 1
      %s220 = scalar_select %p219, %s16, 1
      %s221 = smul.addr %s220, 8
      %s222 = scalar_lea.vmem %s5, %s221
      %v225 = vld [vmem:[%s218] sm:$0x3]
      %v226 = vld [vmem:[%s218 + $0x2] sm:$0x3]
      %v227 = vld [vmem:[%s218 + $0x4] sm:$0x3]
      %v228 = vld [vmem:[%s218 + $0x6] sm:$0x3]
      %vm229 = vcmask 517120
      %v232 = vsel %vm229, %v225, 4286644096
      %v235 = vsel %vm229, %v226, 4286644096
      %v238 = vsel %vm229, %v227, 4286644096
      %v241 = vsel %vm229, %v228, 4286644096
      %v243 = vmax.bf16 %v232, %v235
      %v244 = vmax.bf16 %v238, %v241
      %v245 = vmax.bf16 %v243, %v244
      %v246 = vlaneseq
      %v247 = vand.u32 %v246, 127
      %v248 = vand.u32 %v247, 7
      %v251 = vunpack.c.l.s4 1983009808
      %v252 = vunpack.c.0.s8 %v251
      %v253 = vlaneseq
      %v254 = vshrl.u32 %v253, 7
      %v255 = vsub.s32 %v252, %v254
      %v256 = vrot.slane %v245, %v255
      %257 = vrot.lane.b32.xlu0 %v256, 73
      %v258 = vpop.permute.xlu0 %257
      %259 = vrot.lane.b32.xlu0 %v256, 9
      %v260 = vpop.permute.xlu0 %259
      %vm261 = vcmask 72704
      %v264 = vsel %vm261, %v258, %v260
      %vm266 = vcmp.ge.s32.totalorder %v247, 8
      %vm267 = vcmp.lt.s32.totalorder %v247, 72
      %vm268 = vmand %vm266, %vm267
      %vm269 = vcmp.ge.s32.totalorder %v248, 1
      %vm270 = vmand %vm268, %vm269
      %vm271 = vcmp.lt.s32.totalorder %v248, 9
      %vm272 = vmand %vm270, %vm271
      %v273 = vsel %vm272, 1, 0
      %vm274 = vcmp.eq.s32.totalorder %v273, 1
      %vm275 = vmpackc.low %vm274, %vm274
      %v276 = vsel %vm275, %v264, 0
      %277 = vrot.lane.b32.xlu0 %v256, 72
      %v278 = vpop.permute.xlu0 %277
      %279 = vrot.lane.b32.xlu0 %v256, 8
      %v280 = vpop.permute.xlu0 %279
      %vm281 = vcmask 64512
      %v284 = vsel %vm281, %v278, %v280
      %vm286 = vcmp.ge.s32.totalorder %v248, 0
      %vm287 = vmand %vm268, %vm286
      %vm288 = vcmp.lt.s32.totalorder %v248, 8
      %vm289 = vmand %vm287, %vm288
      %v290 = vsel %vm289, 1, 0
      %vm291 = vcmp.eq.s32.totalorder %v290, 1
      %vm292 = vmpackc.low %vm291, %vm291
      %v293 = vsel %vm292, %v284, 0
      %294 = vrot.lane.b32.xlu0 %v256, 71
      %v295 = vpop.permute.xlu0 %294
      %296 = vrot.lane.b32.xlu0 %v256, 7
      %v297 = vpop.permute.xlu0 %296
      %vm298 = vcmask 56320
      %v301 = vsel %vm298, %v295, %v297
      %vm303 = vcmp.ge.s32.totalorder %v248, 4294967295
      %vm304 = vmand %vm268, %vm303
      %vm305 = vcmp.lt.s32.totalorder %v248, 7
      %vm306 = vmand %vm304, %vm305
      %v307 = vsel %vm306, 1, 0
      %vm308 = vcmp.eq.s32.totalorder %v307, 1
      %vm309 = vmpackc.low %vm308, %vm308
      %v310 = vsel %vm309, %v301, 0
      %311 = vrot.lane.b32.xlu0 %v256, 65
      %v312 = vpop.permute.xlu0 %311
      %313 = vrot.lane.b32.xlu0 %v256, 1
      %v314 = vpop.permute.xlu0 %313
      %vm315 = vcmask 7168
      %v318 = vsel %vm315, %v312, %v314
      %vm320 = vcmp.ge.s32.totalorder %v247, 0
      %vm321 = vcmp.lt.s32.totalorder %v247, 64
      %vm322 = vmand %vm320, %vm321
      %vm323 = vmand %vm322, %vm269
      %vm324 = vmand %vm323, %vm271
      %v325 = vsel %vm324, 1, 0
      %vm326 = vcmp.eq.s32.totalorder %v325, 1
      %vm327 = vmpackc.low %vm326, %vm326
      %v328 = vsel %vm327, %v318, 0
      %329 = vrot.lane.b32.xlu0 %v256, 127
      %v330 = vpop.permute.xlu0 %329
      %331 = vrot.lane.b32.xlu0 %v256, 63
      %v332 = vpop.permute.xlu0 %331
      %vm333 = vcmask 515072
      %v336 = vsel %vm333, %v330, %v332
      %vm338 = vmand %vm322, %vm303
      %vm339 = vmand %vm338, %vm305
      %v340 = vsel %vm339, 1, 0
      %vm341 = vcmp.eq.s32.totalorder %v340, 1
      %vm342 = vmpackc.low %vm341, %vm341
      %v343 = vsel %vm342, %v336, 0
      %344 = vrot.lane.b32.xlu0 %v256, 121
      %v345 = vpop.permute.xlu0 %344
      %346 = vrot.lane.b32.xlu0 %v256, 57
      %v347 = vpop.permute.xlu0 %346
      %vm348 = vcmask 465920
      %v351 = vsel %vm348, %v345, %v347
      %vm353 = vcmp.ge.s32.totalorder %v247, 4294967288
      %vm354 = vcmp.lt.s32.totalorder %v247, 56
      %vm355 = vmand %vm353, %vm354
      %vm356 = vmand %vm355, %vm269
      %vm357 = vmand %vm356, %vm271
      %v358 = vsel %vm357, 1, 0
      %vm359 = vcmp.eq.s32.totalorder %v358, 1
      %vm360 = vmpackc.low %vm359, %vm359
      %v361 = vsel %vm360, %v351, 0
      %362 = vrot.lane.b32.xlu0 %v256, 120
      %v363 = vpop.permute.xlu0 %362
      %364 = vrot.lane.b32.xlu0 %v256, 56
      %v365 = vpop.permute.xlu0 %364
      %vm366 = vcmask 457728
      %v369 = vsel %vm366, %v363, %v365
      %vm371 = vmand %vm355, %vm286
      %vm372 = vmand %vm371, %vm288
      %v373 = vsel %vm372, 1, 0
      %vm374 = vcmp.eq.s32.totalorder %v373, 1
      %vm375 = vmpackc.low %vm374, %vm374
      %v376 = vsel %vm375, %v369, 0
      %377 = vrot.lane.b32.xlu0 %v256, 119
      %v378 = vpop.permute.xlu0 %377
      %379 = vrot.lane.b32.xlu0 %v256, 55
      %v380 = vpop.permute.xlu0 %379
      %vm381 = vcmask 449536
      %v384 = vsel %vm381, %v378, %v380
      %vm386 = vmand %vm355, %vm303
      %vm387 = vmand %vm386, %vm305
      %v388 = vsel %vm387, 1, 0
      %vm389 = vcmp.eq.s32.totalorder %v388, 1
      %vm390 = vmpackc.low %vm389, %vm389
      %v391 = vsel %vm390, %v384, 0
      %v393 = vrot.slane %v293, 6
      %v395 = vrot.slane %v310, 4
      %v397 = vrot.slane %v328, 2
      %v399 = vrot.slane %v343, 6
      %v401 = vrot.slane %v361, 4
      %v403 = vrot.slane %v376, 2
      %vm404 = vcmask 1041408
      %v407 = vsel %vm404, %v276, %v393
      %vm408 = vcmask 1043456
      %v410 = vsel %vm408, %v407, %v395
      %vm411 = vcmask 1045504
      %v413 = vsel %vm411, %v410, %v397
      %v417 = vsel %vm404, %v245, %v399
      %v419 = vsel %vm408, %v417, %v401
      %v421 = vsel %vm411, %v419, %v403
      %v423 = vld [vmem:[%s1] sm:$0xf]
      %v424 = vld [vmem:[%s2] sm:$0xff]
      %426 = vset.pattern.permute.xlu0 0
      %427 = vperm.xlu0 %426, %v424
      %v428 = vpop.permute.xlu0 %427
      %vm430 = vcmask 293888
      %v432 = vsel %vm430, %v423, 0
      %v435 = vsel %vm404, %v391, 0
      %437 = vmatprep.subr.bf16.mxu0 0
      %438 = vmatpush1.bf16.msra.mxu0 %v413
      %439 = vmatprep.subr.bf16.mxu0 0
      %440 = vmatpush1.bf16.msra.mxu0 %v421
      %441 = vmatprep.subr.bf16.mxu0 0
      %442 = vmatpush1.bf16.msra.mxu0 %v435
      %443 = vmatprep.subr.bf16.mxu0 0
      %444 = vmatpush1.bf16.msra.mxu0 0
      %445 = vmatprep.subr.bf16.mxu0 0
      %446 = vmatpush1.bf16.msra.mxu0 0
      %447 = vmatprep.subr.bf16.mxu0 0
      %448 = vmatpush1.bf16.msra.mxu0 0
      %449 = vmatprep.subr.bf16.mxu0 0
      %450 = vmatpush1.bf16.msra.mxu0 0
      %451 = vmatprep.subr.bf16.mxu0 0
      %452 = vmatpush1.bf16.msra.mxu0 0
      %453 = vmatprep.subr.bf16.mxu0 0
      %454 = vmatpush1.bf16.msra.mxu0 0
      %455 = vmatprep.subr.bf16.mxu0 0
      %456 = vmatpush1.bf16.msra.mxu0 0
      %457 = vmatprep.subr.bf16.mxu0 0
      %458 = vmatpush1.bf16.msra.mxu0 0
      %459 = vmatprep.subr.bf16.mxu0 0
      %460 = vmatpush1.bf16.msra.mxu0 0
      %461 = vmatprep.subr.bf16.mxu0 0
      %462 = vmatpush1.bf16.msra.mxu0 0
      %463 = vmatprep.subr.bf16.mxu0 0
      %464 = vmatpush1.bf16.msra.mxu0 0
      %465 = vmatprep.subr.bf16.mxu0 0
      %466 = vmatpush1.bf16.msra.mxu0 0
      %467 = vmatprep.subr.bf16.mxu0 0
      %468 = vmatpush1.bf16.msra.mxu0 0
      %469 = vmatprep.mubr.bf16.mxu0 0
      %470 = vmatmul.mubr.bf16.gmra.mrb[0].mxu0 %v432
      %v471 = vpop.f32.mrb[0].mxu0
      %v472 = vadd.f32 %v428, %v471
      %v473 = vpop.f32.mrb[0].mxu0
      %v474 = vpop.f32.mrb[0].mxu0
      %v475 = vpop.f32.mrb[0].mxu0
      %476 = vdwg.mxu0
      %v477 = vmax.f32 %v472, 0.0
      %v478 = vpack.c.bf16 %v477, %v477
      %480 = vrot.lane.b32.xlu0 %v478, 73
      %v481 = vpop.permute.xlu0 %480
      %482 = vrot.lane.b32.xlu0 %v478, 9
      %v483 = vpop.permute.xlu0 %482
      %v486 = vsel %vm261, %v481, %v483
      %v488 = vsel %vm275, %v486, 0
      %489 = vrot.lane.b32.xlu0 %v478, 72
      %v490 = vpop.permute.xlu0 %489
      %491 = vrot.lane.b32.xlu0 %v478, 8
      %v492 = vpop.permute.xlu0 %491
      %v495 = vsel %vm281, %v490, %v492
      %v497 = vsel %vm292, %v495, 0
      %498 = vrot.lane.b32.xlu0 %v478, 71
      %v499 = vpop.permute.xlu0 %498
      %500 = vrot.lane.b32.xlu0 %v478, 7
      %v501 = vpop.permute.xlu0 %500
      %v504 = vsel %vm298, %v499, %v501
      %v506 = vsel %vm309, %v504, 0
      %507 = vrot.lane.b32.xlu0 %v478, 65
      %v508 = vpop.permute.xlu0 %507
      %509 = vrot.lane.b32.xlu0 %v478, 1
      %v510 = vpop.permute.xlu0 %509
      %v513 = vsel %vm315, %v508, %v510
      %v515 = vsel %vm327, %v513, 0
      %516 = vrot.lane.b32.xlu0 %v478, 127
      %v517 = vpop.permute.xlu0 %516
      %518 = vrot.lane.b32.xlu0 %v478, 63
      %v519 = vpop.permute.xlu0 %518
      %v522 = vsel %vm333, %v517, %v519
      %v524 = vsel %vm342, %v522, 0
      %525 = vrot.lane.b32.xlu0 %v478, 121
      %v526 = vpop.permute.xlu0 %525
      %527 = vrot.lane.b32.xlu0 %v478, 57
      %v528 = vpop.permute.xlu0 %527
      %v531 = vsel %vm348, %v526, %v528
      %v533 = vsel %vm360, %v531, 0
      %534 = vrot.lane.b32.xlu0 %v478, 120
      %v535 = vpop.permute.xlu0 %534
      %536 = vrot.lane.b32.xlu0 %v478, 56
      %v537 = vpop.permute.xlu0 %536
      %v540 = vsel %vm366, %v535, %v537
      %v542 = vsel %vm375, %v540, 0
      %543 = vrot.lane.b32.xlu0 %v478, 119
      %v544 = vpop.permute.xlu0 %543
      %545 = vrot.lane.b32.xlu0 %v478, 55
      %v546 = vpop.permute.xlu0 %545
      %v549 = vsel %vm381, %v544, %v546
      %v551 = vsel %vm390, %v549, 0
      %v553 = vrot.slane %v497, 4
      %v555 = vrot.slane %v515, 4
      %v557 = vrot.slane %v524, 4
      %v559 = vrot.slane %v542, 4
      %v562 = vsel %vm408, %v488, %v553
      %v566 = vsel %vm408, %v506, %v555
      %v570 = vsel %vm408, %v478, %v557
      %v574 = vsel %vm408, %v533, %v559
      %v576 = vld [vmem:[%s3] sm:$0xf]
      %v577 = vld [vmem:[%s4] sm:$0xff]
      %579 = vset.pattern.permute.xlu0 0
      %580 = vperm.xlu0 %579, %v577
      %v581 = vpop.permute.xlu0 %580
      %vm583 = vcmask 588800
      %v585 = vsel %vm583, %v576, 0
      %v588 = vsel %vm408, %v551, 0
      %590 = vmatprep.subr.bf16.mxu0 0
      %591 = vmatpush1.bf16.msra.mxu0 %v562
      %592 = vmatprep.subr.bf16.mxu0 0
      %593 = vmatpush1.bf16.msra.mxu0 %v566
      %594 = vmatprep.subr.bf16.mxu0 0
      %595 = vmatpush1.bf16.msra.mxu0 %v570
      %596 = vmatprep.subr.bf16.mxu0 0
      %597 = vmatpush1.bf16.msra.mxu0 %v574
      %598 = vmatprep.subr.bf16.mxu0 0
      %599 = vmatpush1.bf16.msra.mxu0 %v588
      %600 = vmatprep.subr.bf16.mxu0 0
      %601 = vmatpush1.bf16.msra.mxu0 0
      %602 = vmatprep.subr.bf16.mxu0 0
      %603 = vmatpush1.bf16.msra.mxu0 0
      %604 = vmatprep.subr.bf16.mxu0 0
      %605 = vmatpush1.bf16.msra.mxu0 0
      %606 = vmatprep.subr.bf16.mxu0 0
      %607 = vmatpush1.bf16.msra.mxu0 0
      %608 = vmatprep.subr.bf16.mxu0 0
      %609 = vmatpush1.bf16.msra.mxu0 0
      %610 = vmatprep.subr.bf16.mxu0 0
      %611 = vmatpush1.bf16.msra.mxu0 0
      %612 = vmatprep.subr.bf16.mxu0 0
      %613 = vmatpush1.bf16.msra.mxu0 0
      %614 = vmatprep.subr.bf16.mxu0 0
      %615 = vmatpush1.bf16.msra.mxu0 0
      %616 = vmatprep.subr.bf16.mxu0 0
      %617 = vmatpush1.bf16.msra.mxu0 0
      %618 = vmatprep.subr.bf16.mxu0 0
      %619 = vmatpush1.bf16.msra.mxu0 0
      %620 = vmatprep.subr.bf16.mxu0 0
      %621 = vmatpush1.bf16.msra.mxu0 0
      %622 = vmatprep.mubr.bf16.mxu0 0
      %623 = vmatmul.mubr.bf16.gmra.mrb[0].mxu0 %v585
      %v624 = vpop.f32.mrb[0].mxu0
      %v625 = vadd.f32 %v581, %v624
      %v626 = vpop.f32.mrb[0].mxu0
      %v627 = vpop.f32.mrb[0].mxu0
      %v628 = vpop.f32.mrb[0].mxu0
      %629 = vdwg.mxu0
      %v630 = vmax.f32 %v625, 0.0
      %vm631 = vcmask 523264
      %632 = vst.msk [vmem:[%s222] sm:$0xff] %vm631, %v630
      %p633 = scmp.lt.s32.totalorder %s16, 1
      %s634 = scalar_select %p633, %s16, 1
      %s635 = smul.addr %s634, 8
      %s636 = scalar_lea.vmem %s5, %s635
      // Predicated region
      $region41: #{down_forward.1} parent=39 // pred_check
        %p637 = pneg %p144
      $region42: #{down_forward.1} parent=39 // pred_check_branch
        %639 = sbr.rel (%p637) target = $region44
      $region43: #{down_forward.1} parent=39 // pred_region
        _
      $region44: #{down_forward.1} parent=39 // pred_fallthru
        _
    $region40: #{down_forward.1} parent=5 // pred_fallthru
      _
    %p640 = scmp.le.s32.totalorder 2, %s11
    // Predicated region
    $region45: #{down_forward.1} parent=5 // pred_check
      %p641 = pneg %p640
    $region46: #{down_forward.1} parent=5 // pred_check_branch
      %643 = sbr.rel (%p641) target = $region48
    $region47: #{down_forward.1} parent=5 // pred_region
      %s644 = ssub.s32 %s11, 2
      // Predicated region
      $region49: #{down_forward.1} parent=47 // pred_check
        %p645 = pneg %p150
      $region50: #{down_forward.1} parent=47 // pred_check_branch
        %647 = sbr.rel (%p645) target = $region52
      $region51: #{down_forward.1} parent=47 // pred_region
        %p648 = scmp.lt.s32.totalorder %s17, 1
        %s649 = scalar_select %p648, %s17, 1
        %s650 = smul.addr %s649, 8
        %s651 = scalar_lea.vmem %s5, %s650
      $region52: #{down_forward.1} parent=47 // pred_fallthru
        _
    $region48: #{down_forward.1} parent=5 // pred_fallthru
      _
  $region6: #{down_forward.1} parent=0 // loop_footer
    %s15 = sadd.s32 1, %s11
  $region7: #{down_forward.1} parent=0 // loop_footer_branch
    %10 = sbr.rel target = $region3
  $region8: #{down_forward.1} parent=0 // loop_exit
    _

</llo_original>
